<compile_context>
chip_gen: v7x
topology: tpu7x:2x2x1
jax: 0.10.0
libtpu: 0.0.40
codegen_flags: <defaults>
</compile_context>

<pallas_src>
import jax
import jax.numpy as jnp
from jax.experimental import pallas as pl
from jax.experimental.pallas import tpu as pltpu


def _round_up(x, m):
    return (x + m - 1) // m * m


# ------------------------------------------------------------------ kernel --
def ffn_kernel(x_ref, w1_ref, b1_ref, w2_ref, b2_ref, o_ref, acc_ref):
    # x_ref:  (tm, d_model_pad)      compute dtype (bf16)
    # w1_ref: (d_model_pad, tk)      compute dtype
    # b1_ref: (1, tk)                f32
    # w2_ref: (tk, d_model_pad)      compute dtype
    # b2_ref: (1, d_model_pad)       f32
    # o_ref:  (tm, d_model_pad)      output dtype
    # acc_ref:(tm, d_model_pad)      f32 accumulator (resident across k)
    k = pl.program_id(1)

    # Init accumulator with b2 folded in -> bias added exactly once per tile.
    @pl.when(k == 0)
    def _():
        acc_ref[...] = jnp.broadcast_to(b2_ref[...], acc_ref.shape)

    # First matmul on this d_ff slice; bias + ReLU in f32 (elementwise over
    # d_ff, so per-slice application is exact).
    h = jnp.dot(x_ref[...], w1_ref[...], preferred_element_type=jnp.float32)
    h = jnp.maximum(h + b1_ref[...], 0.0)
    # dropout: identity (eval mode)

    # Second matmul: accumulate this slice's contribution in f32.
    acc_ref[...] += jnp.dot(h.astype(w2_ref.dtype), w2_ref[...],
                            preferred_element_type=jnp.float32)

    @pl.when(k == pl.num_programs(1) - 1)
    def _():
        o_ref[...] = acc_ref[...].astype(o_ref.dtype)


# ---------------------------------------------------------------- helpers --
def _tpu_vmem_capacity():
    try:
        info = pltpu.get_tpu_info()
        cap = getattr(info, "vmem_capacity_bytes", None)
        if cap:
            return int(cap)
    except Exception:
        pass
    return 64 * 2**20  # conservative fallback (v7x per-core size)


def _vmem_estimate(tm, tk, d_model_pad, cbytes, obytes):
    return (2 * tm * d_model_pad * cbytes          # x tile (double-buffered)
            + 2 * d_model_pad * tk * cbytes        # W1 slice (double-buffered)
            + 2 * tk * d_model_pad * cbytes        # W2 slice (double-buffered)
            + 2 * tk * 4 + 2 * d_model_pad * 4     # b1 / b2 (f32)
            + 2 * tm * d_model_pad * obytes        # out tile (double-buffered)
            + tm * d_model_pad * 4                 # f32 accumulator scratch
            + tm * tk * (4 + cbytes)               # h in f32 + bf16 copy
            + 2 * 2**20)                           # Mosaic internal headroom


def prepare_ffn_params(w1, b1, w2, b2, *, compute_dtype=jnp.bfloat16, tk=512):
    """One-time weight preparation: cast to the MXU compute dtype and zero-pad
    to TPU-friendly shapes, so the per-call wrapper never re-casts weights."""
    d_model, d_ff = w1.shape
    assert w2.shape == (d_ff, d_model)
    assert b1.shape == (d_ff,) and b2.shape == (d_model,)

    # Lane-dense d_model (multiple of 128) -> unmasked vector stores.
    d_model_pad = d_model if d_model % 128 == 0 else _round_up(d_model, 128)

    # d_ff tiling: pad to a multiple of 128, pick the largest tk (multiple of
    # 128, <= tk target) that divides it.  Never a whole-d_ff fallback block.
    tk_target = max(128, tk - tk % 128)
    if d_ff >= 128:
        d_ff_pad = _round_up(d_ff, 128)
        tk_eff = min(tk_target, d_ff_pad)
        while d_ff_pad % tk_eff != 0:
            tk_eff -= 128
    else:  # tiny d_ff: keep whole (full-dim block is legal)
        d_ff_pad = d_ff
        tk_eff = d_ff

    w1p = jnp.zeros((d_model_pad, d_ff_pad), compute_dtype)
    w1p = w1p.at[:d_model, :d_ff].set(w1.astype(compute_dtype))
    w2p = jnp.zeros((d_ff_pad, d_model_pad), compute_dtype)
    w2p = w2p.at[:d_ff, :d_model].set(w2.astype(compute_dtype))
    b1p = jnp.zeros((1, d_ff_pad), jnp.float32)
    b1p = b1p.at[0, :d_ff].set(b1.astype(jnp.float32))
    b2p = jnp.zeros((1, d_model_pad), jnp.float32)
    b2p = b2p.at[0, :d_model].set(b2.astype(jnp.float32))

    return dict(w1=w1p, b1=b1p, w2=w2p, b2=b2p,
                d_model=d_model, d_ff=d_ff,
                d_model_pad=d_model_pad, d_ff_pad=d_ff_pad,
                tk=tk_eff, compute_dtype=compute_dtype)


# ------------------------------------------------------------------- call --
def feed_forward_block(x, params):
    """x: (..., d_model) -> (..., d_model) = relu(x@W1+b1)@W2+b2 (eval-mode dropout)."""
    d_model = params["d_model"]
    d_model_pad = params["d_model_pad"]
    d_ff_pad = params["d_ff_pad"]
    tk_eff = params["tk"]
    compute_dtype = params["compute_dtype"]
    w1, b1, w2, b2 = params["w1"], params["b1"], params["w2"], params["b2"]

    orig_shape = x.shape
    assert x.shape[-1] == d_model
    out_dtype = x.dtype
    M = 1
    for d in orig_shape[:-1]:
        M *= d
    M = max(M, 1)

    cbytes = jnp.dtype(compute_dtype).itemsize
    obytes = jnp.dtype(out_dtype).itemsize

    # Per-generation VMEM budget with explicit headroom (no uniform 64 MiB cap).
    vmem_cap = _tpu_vmem_capacity()
    big_vmem = vmem_cap > 80 * 2**20          # 128 MiB parts: v5e / v6e
    budget = int(vmem_cap * (0.80 if big_vmem else 0.75))

    # Token tile: arithmetic intensity vs weight bytes is ~tm FLOP/byte, so go
    # big where VMEM allows (768 on 128 MiB parts, 512 on 64 MiB v7x).
    tm_target = 768 if big_vmem else 512
    tm_eff = min(tm_target, _round_up(M, 16))
    tm_eff = max(16, tm_eff - tm_eff % 16)
    while tm_eff > 16 and _vmem_estimate(tm_eff, tk_eff, d_model_pad,
                                         cbytes, obytes) > budget:
        tm_eff = max(16, _round_up(tm_eff // 2, 16))
    while (tk_eff > 128 and d_ff_pad % 128 == 0
           and _vmem_estimate(tm_eff, tk_eff, d_model_pad,
                              cbytes, obytes) > budget):
        tk_eff -= 128
        while d_ff_pad % tk_eff != 0:
            tk_eff -= 128

    # 2-TensorCore parts (v7x, detected via 64 MiB VMEM): ensure >= 2 token
    # tiles so both cores get work for small-M / decode-style shapes.
    if (not big_vmem) and M <= tm_eff and M >= 32:
        tm_eff = max(16, _round_up((M + 1) // 2, 16))

    M_pad = _round_up(M, tm_eff)

    x2d = x.reshape(M, d_model).astype(compute_dtype)
    if M_pad != M or d_model_pad != d_model:
        x2d = jnp.pad(x2d, ((0, M_pad - M), (0, d_model_pad - d_model)))

    grid = (M_pad // tm_eff, d_ff_pad // tk_eff)

    weight_bytes = 2 * d_model_pad * d_ff_pad * cbytes
    cost = pl.CostEstimate(
        flops=4 * M_pad * d_model_pad * d_ff_pad,
        transcendentals=0,
        bytes_accessed=(M_pad * d_model_pad * (cbytes + obytes)
                        + grid[0] * weight_bytes
                        + 4 * (d_ff_pad + d_model_pad)))

    out2d = pl.pallas_call(
        ffn_kernel,
        out_shape=jax.ShapeDtypeStruct((M_pad, d_model_pad), out_dtype),
        grid_spec=pltpu.PrefetchScalarGridSpec(
            num_scalar_prefetch=0,
            grid=grid,
            in_specs=[
                pl.BlockSpec((tm_eff, d_model_pad), lambda i, k: (i, 0)),   # x
                pl.BlockSpec((d_model_pad, tk_eff), lambda i, k: (0, k)),   # W1
                pl.BlockSpec((1, tk_eff), lambda i, k: (0, k)),             # b1
                pl.BlockSpec((tk_eff, d_model_pad), lambda i, k: (k, 0)),   # W2
                pl.BlockSpec((1, d_model_pad), lambda i, k: (0, 0)),        # b2
            ],
            out_specs=pl.BlockSpec((tm_eff, d_model_pad), lambda i, k: (i, 0)),
            scratch_shapes=[pltpu.VMEM((tm_eff, d_model_pad), jnp.float32)],
        ),
        compiler_params=pltpu.CompilerParams(
            dimension_semantics=("parallel", "arbitrary"),
            vmem_limit_bytes=int(budget)),
        cost_estimate=cost,
    )(x2d, w1, b1, w2, b2)

    out2d = out2d[:M, :d_model]
    return out2d.reshape(orig_shape)


if __name__ == "__main__":
    # Small shapes consistent with the module's forward: (batch, seq, d_model).
    B, S, d_model, d_ff = 2, 8, 32, 64
    dropout = 0.0  # nn.Dropout is identity in eval mode

    key = jax.random.PRNGKey(0)
    kx, k1, kb1, k2, kb2 = jax.random.split(key, 5)

    x = jax.random.normal(kx, (B, S, d_model), dtype=jnp.float32)
    # Parameters as W = nn.Linear.weight.T so that y = x @ W + b.
    w1 = jax.random.normal(k1, (d_model, d_ff), dtype=jnp.float32) * 0.1
    b1 = jax.random.normal(kb1, (d_ff,), dtype=jnp.float32) * 0.1
    w2 = jax.random.normal(k2, (d_ff, d_model), dtype=jnp.float32) * 0.1
    b2 = jax.random.normal(kb2, (d_model,), dtype=jnp.float32) * 0.1

    params = prepare_ffn_params(w1, b1, w2, b2)   # one-time cast / pad
    out = feed_forward_block(x, params)
    jax.block_until_ready(out)

    # Pure-JAX f32 reference; kernel uses bf16 MXU operands with f32
    # accumulation -> bf16-appropriate tolerance.
    ref = jnp.maximum(x @ w1 + b1, 0.0) @ w2 + b2
    assert out.shape == (B, S, d_model)
    assert jnp.allclose(out, ref, atol=5e-2, rtol=5e-2), "mismatch vs reference"

    print("KERNEL_OK")
</pallas_src>

<mosaic_0001>
module attributes {stable_mosaic.version = 11 : i64} {
  func.func @ffn_kernel(%arg0: i32, %arg1: i32, %arg2: memref<16x128xbf16, #tpu.memory_space<vmem>>, %arg3: memref<128x64xbf16, #tpu.memory_space<vmem>>, %arg4: memref<1x64xf32, #tpu.memory_space<vmem>>, %arg5: memref<64x128xbf16, #tpu.memory_space<vmem>>, %arg6: memref<1x128xf32, #tpu.memory_space<vmem>>, %arg7: memref<16x128xf32, #tpu.memory_space<vmem>>, %arg8: memref<16x128xf32, #tpu.memory_space<vmem>>) attributes {dimension_semantics = [#tpu.dimension_semantics<parallel>, #tpu.dimension_semantics<arbitrary>], iteration_bounds = array<i64: 1, 1>, scalar_prefetch = 0 : i64, scratch_operands = 1 : i64, tpu.core_type = #tpu.core_type<tc>, window_params = [{transform_indices = @transform_0, window_bounds = array<i64: 16, 128>}, {transform_indices = @transform_1, window_bounds = array<i64: 128, 64>}, {transform_indices = @transform_2, window_bounds = array<i64: 1, 64>}, {transform_indices = @transform_3, window_bounds = array<i64: 64, 128>}, {pipeline_mode = #tpu.pipeline_mode<synchronous>, transform_indices = @transform_4, window_bounds = array<i64: 1, 128>}, {transform_indices = @transform_5, window_bounds = array<i64: 16, 128>}]} {
    %c0_i32 = arith.constant 0 : i32
    %0 = arith.cmpi eq, %arg1, %c0_i32 : i32
    %1 = arith.extui %0 : i1 to i32
    %c0_i32_0 = arith.constant 0 : i32
    %2 = arith.cmpi ne, %1, %c0_i32_0 : i32
    scf.if %2 {
      %c0_16 = arith.constant 0 : index
      %c0_17 = arith.constant 0 : index
      %20 = vector.load %arg6[%c0_16, %c0_17] : memref<1x128xf32, #tpu.memory_space<vmem>>, vector<1x128xf32>
      %21 = vector.shape_cast %20 : vector<1x128xf32> to vector<1x128xf32>
      %22 = vector.broadcast %21 : vector<1x128xf32> to vector<16x128xf32>
      %c0_18 = arith.constant 0 : index
      %c0_19 = arith.constant 0 : index
      %23 = vector.load %arg8[%c0_18, %c0_19] : memref<16x128xf32, #tpu.memory_space<vmem>>, vector<16x128xf32>
      tpu.vector_store %arg8[%c0_18, %c0_19], %22 {strides = array<i32>} : memref<16x128xf32, #tpu.memory_space<vmem>>, vector<16x128xf32>,
    } else {
    }
    %c0 = arith.constant 0 : index
    %c0_1 = arith.constant 0 : index
    %3 = vector.load %arg2[%c0, %c0_1] : memref<16x128xbf16, #tpu.memory_space<vmem>>, vector<16x128xbf16>
    %c0_2 = arith.constant 0 : index
    %c0_3 = arith.constant 0 : index
    %4 = vector.load %arg3[%c0_2, %c0_3] : memref<128x64xbf16, #tpu.memory_space<vmem>>, vector<128x64xbf16>
    %cst = arith.constant dense<0.000000e+00> : vector<16x64xf32>
    %5 = tpu.matmul %3, %4, %cst {dimension_numbers = #tpu.dot_dimension_numbers<[1], [0], [0], [1], [0, 0, 1, 1], [], []>} : vector<16x128xbf16>, vector<128x64xbf16>, vector<16x64xf32> -> vector<16x64xf32>
    %c0_4 = arith.constant 0 : index
    %c0_5 = arith.constant 0 : index
    %6 = vector.load %arg4[%c0_4, %c0_5] : memref<1x64xf32, #tpu.memory_space<vmem>>, vector<1x64xf32>
    %7 = vector.broadcast %6 : vector<1x64xf32> to vector<16x64xf32>
    %8 = arith.addf %5, %7 : vector<16x64xf32>
    %cst_6 = arith.constant 0.000000e+00 : f32
    %9 = vector.broadcast %cst_6 : f32 to vector<16x64xf32>
    %10 = arith.maximumf %8, %9 : vector<16x64xf32>
    %c0_7 = arith.constant 0 : index
    %c0_8 = arith.constant 0 : index
    %11 = vector.load %arg8[%c0_7, %c0_8] : memref<16x128xf32, #tpu.memory_space<vmem>>, vector<16x128xf32>
    %12 = arith.truncf %10 : vector<16x64xf32> to vector<16x64xbf16>
    %c0_9 = arith.constant 0 : index
    %c0_10 = arith.constant 0 : index
    %13 = vector.load %arg5[%c0_9, %c0_10] : memref<64x128xbf16, #tpu.memory_space<vmem>>, vector<64x128xbf16>
    %cst_11 = arith.constant dense<0.000000e+00> : vector<16x128xf32>
    %14 = tpu.matmul %12, %13, %cst_11 {dimension_numbers = #tpu.dot_dimension_numbers<[1], [0], [0], [1], [0, 0, 1, 1], [], []>} : vector<16x64xbf16>, vector<64x128xbf16>, vector<16x128xf32> -> vector<16x128xf32>
    %15 = arith.addf %11, %14 : vector<16x128xf32>
    %c0_12 = arith.constant 0 : index
    %c0_13 = arith.constant 0 : index
    %16 = vector.load %arg8[%c0_12, %c0_13] : memref<16x128xf32, #tpu.memory_space<vmem>>, vector<16x128xf32>
    tpu.vector_store %arg8[%c0_12, %c0_13], %15 {strides = array<i32>} : memref<16x128xf32, #tpu.memory_space<vmem>>, vector<16x128xf32>,
    %c0_i32_14 = arith.constant 0 : i32
    %17 = arith.cmpi eq, %arg1, %c0_i32_14 : i32
    %18 = arith.extui %17 : i1 to i32
    %c0_i32_15 = arith.constant 0 : i32
    %19 = arith.cmpi ne, %18, %c0_i32_15 : i32
    scf.if %19 {
      %c0_16 = arith.constant 0 : index
      %c0_17 = arith.constant 0 : index
      %20 = vector.load %arg8[%c0_16, %c0_17] : memref<16x128xf32, #tpu.memory_space<vmem>>, vector<16x128xf32>
      %c0_18 = arith.constant 0 : index
      %c0_19 = arith.constant 0 : index
      %21 = vector.load %arg7[%c0_18, %c0_19] : memref<16x128xf32, #tpu.memory_space<vmem>>, vector<16x128xf32>
      tpu.vector_store %arg7[%c0_18, %c0_19], %20 {strides = array<i32>} : memref<16x128xf32, #tpu.memory_space<vmem>>, vector<16x128xf32>,
    } else {
    }
    return
  }
  func.func @transform_0(%arg0: i32, %arg1: i32) -> (i32, i32) {
    %c0_i32 = arith.constant 0 : i32
    %c0_i32_0 = arith.constant 0 : i32
    return %arg0, %c0_i32 : i32, i32
  }
  func.func @transform_1(%arg0: i32, %arg1: i32) -> (i32, i32) {
    %c0_i32 = arith.constant 0 : i32
    %c0_i32_0 = arith.constant 0 : i32
    return %c0_i32, %arg1 : i32, i32
  }
  func.func @transform_2(%arg0: i32, %arg1: i32) -> (i32, i32) {
    %c0_i32 = arith.constant 0 : i32
    %c0_i32_0 = arith.constant 0 : i32
    return %c0_i32, %arg1 : i32, i32
  }
  func.func @transform_3(%arg0: i32, %arg1: i32) -> (i32, i32) {
    %c0_i32 = arith.constant 0 : i32
    %c0_i32_0 = arith.constant 0 : i32
    return %arg1, %c0_i32 : i32, i32
  }
  func.func @transform_4(%arg0: i32, %arg1: i32) -> (i32, i32) {
    %c0_i32 = arith.constant 0 : i32
    %c0_i32_0 = arith.constant 0 : i32
    %c0_i32_1 = arith.constant 0 : i32
    return %c0_i32, %c0_i32_0 : i32, i32
  }
  func.func @transform_5(%arg0: i32, %arg1: i32) -> (i32, i32) {
    %c0_i32 = arith.constant 0 : i32
    %c0_i32_0 = arith.constant 0 : i32
    return %arg0, %c0_i32 : i32, i32
  }
}

</mosaic_0001>

<llo_original>
// kernel: tpu_custom_call.1
$region0: #{tpu_custom_call.1}
  #allocation0 [shape = 'u32[]', space=smem, size = 0x4, offset = 0x4, fixed_abs, tag = 'smem constant byte address 0x4 - core index']
  #allocation1 [shape = 'u32[144,128]{1,0:T(1,128)}', space=vmem, size = 0x12000, scoped, tag = 'internal scratch']
  #allocation2 [shape = 'f32[16,128]{1,0:T(8,128)}', space=vmem, size = 0x2000, scoped, tag = 'scratch operand']
  %s0 = inlined_call_operand.vmem [shape: bf16[16,128], index: 0, kind: input, shape index: {}]
  %s1 = inlined_call_operand.vmem [shape: bf16[128,64], index: 1, kind: input, shape index: {}]
  %s2 = inlined_call_operand.vmem [shape: f32[1,64], index: 2, kind: input, shape index: {}]
  %s3 = inlined_call_operand.vmem [shape: bf16[64,128], index: 3, kind: input, shape index: {}]
  %s4 = inlined_call_operand.vmem [shape: f32[1,128], index: 4, kind: input, shape index: {}]
  %s5 = inlined_call_operand.hbm [shape: f32[16,128], index: 5, kind: output, shape index: {}]
  %s6 = sld [smem:[#allocation0]]
  $region38: #{tpu_custom_call.1} parent=0
    _
  %s8 = ssub.s32 1, %s6
  %s9 = scalar_select 0, %s8, %s6
  $region1: #{tpu_custom_call.1} parent=0
    #allocation3 [shape = 'u8[8192]{0}', space=vmem, size = 0x2000, scoped, tag = 'output window, operand 0, single buffered']
    #allocation4 [shape = 's32[1]{0}', space=sflag, size = 0x4, scoped, tag = 'scoped memory for tpu_custom_call.1']
    %10 = vsyncpa [#allocation4], 0
    // Predicated region
    $region2: #{tpu_custom_call.1} parent=1 // pred_check
      _
    $region3: #{tpu_custom_call.1} parent=1 // pred_check_branch
      %12 = sbr.rel (0) target = $region5
    $region4: #{tpu_custom_call.1} parent=1 // pred_region
      _
    $region5: #{tpu_custom_call.1} parent=1 // pred_fallthru
      _
    // Predicated region
    $region6: #{tpu_custom_call.1} parent=1 // pred_check
      _
    $region7: #{tpu_custom_call.1} parent=1 // pred_check_branch
      %14 = sbr.rel (0) target = $region9
    $region8: #{tpu_custom_call.1} parent=1 // pred_region
      _
    $region9: #{tpu_custom_call.1} parent=1 // pred_fallthru
      _
    // Predicated region
    $region10: #{tpu_custom_call.1} parent=1 // pred_check
      _
    $region11: #{tpu_custom_call.1} parent=1 // pred_check_branch
      %16 = sbr.rel (0) target = $region13
    $region12: #{tpu_custom_call.1} parent=1 // pred_region
      _
    $region13: #{tpu_custom_call.1} parent=1 // pred_fallthru
      _
    // Predicated region
    $region14: #{tpu_custom_call.1} parent=1 // pred_check
      _
    $region15: #{tpu_custom_call.1} parent=1 // pred_check_branch
      %18 = sbr.rel (0) target = $region17
    $region16: #{tpu_custom_call.1} parent=1 // pred_region
      _
    $region17: #{tpu_custom_call.1} parent=1 // pred_fallthru
      _
    // Predicated region
    $region18: #{tpu_custom_call.1} parent=1 // pred_check
      _
    $region19: #{tpu_custom_call.1} parent=1 // pred_check_branch
      %20 = sbr.rel (0) target = $region21
    $region20: #{tpu_custom_call.1} parent=1 // pred_region
      _
    $region21: #{tpu_custom_call.1} parent=1 // pred_fallthru
      _
    %p22 = scmp.eq.s32.totalorder 0, 0
    // Predicated region
    $region22: #{tpu_custom_call.1} parent=1 // pred_check
      %p23 = pneg %p22
    $region23: #{tpu_custom_call.1} parent=1 // pred_check_branch
      %25 = sbr.rel (%p23) target = $region25
    $region24: #{tpu_custom_call.1} parent=1 // pred_region
      %v26 = vld [vmem:[%s4] sm:$0x1]
      %v28 = vlaneseq
      %v29 = vshrl.u32 %v28, 7
      %v30 = vsub.s32 0, %v29
      %v31 = vrot.slane %v26, %v30
      %33 = vst [vmem:[#allocation2] sm:$0xff] %v31
      %34 = vst [vmem:[#allocation2 + $0x8] sm:$0xff] %v31
    $region25: #{tpu_custom_call.1} parent=1 // pred_fallthru
      _
    %v35 = vld [vmem:[%s0] sm:$0xf]
    %v36 = vld [vmem:[%s0 + $0x4] sm:$0xf]
    %v37 = vld [vmem:[%s1] sm:$0xf]
    %v38 = vld [vmem:[%s1 + $0x4] sm:$0xf]
    %v39 = vld [vmem:[%s1 + $0x8] sm:$0xf]
    %v40 = vld [vmem:[%s1 + $0xc] sm:$0xf]
    %v41 = vld [vmem:[%s1 + $0x10] sm:$0xf]
    %v42 = vld [vmem:[%s1 + $0x14] sm:$0xf]
    %v43 = vld [vmem:[%s1 + $0x18] sm:$0xf]
    %v44 = vld [vmem:[%s1 + $0x1c] sm:$0xf]
    %v45 = vld [vmem:[%s1 + $0x20] sm:$0xf]
    %v46 = vld [vmem:[%s1 + $0x24] sm:$0xf]
    %v47 = vld [vmem:[%s1 + $0x28] sm:$0xf]
    %v48 = vld [vmem:[%s1 + $0x2c] sm:$0xf]
    %v49 = vld [vmem:[%s1 + $0x30] sm:$0xf]
    %v50 = vld [vmem:[%s1 + $0x34] sm:$0xf]
    %v51 = vld [vmem:[%s1 + $0x38] sm:$0xf]
    %v52 = vld [vmem:[%s1 + $0x3c] sm:$0xf]
    %v53 = vld [vmem:[%s2] sm:$0x1]
    %v55 = vlaneseq
    %v56 = vshrl.u32 %v55, 7
    %v57 = vsub.s32 0, %v56
    %v58 = vrot.slane %v53, %v57
    %v62 = vunpack.c.l.b16 %v35
    %v63 = vunpack.c.l.b16 %v36
    %v64 = vpack.c.b16 %v63, %v62
    %v82 = vunpack.c.l.b16 %v37
    %v83 = vunpack.c.l.b16 %v38
    %v84 = vunpack.c.l.b16 %v39
    %v85 = vunpack.c.l.b16 %v40
    %v86 = vunpack.c.l.b16 %v41
    %v87 = vunpack.c.l.b16 %v42
    %v88 = vunpack.c.l.b16 %v43
    %v89 = vunpack.c.l.b16 %v44
    %v90 = vunpack.c.l.b16 %v45
    %v91 = vunpack.c.l.b16 %v46
    %v92 = vunpack.c.l.b16 %v47
    %v93 = vunpack.c.l.b16 %v48
    %v94 = vunpack.c.l.b16 %v49
    %v95 = vunpack.c.l.b16 %v50
    %v96 = vunpack.c.l.b16 %v51
    %v97 = vunpack.c.l.b16 %v52
    %v98 = vpack.c.b16 %v83, %v82
    %v99 = vpack.c.b16 %v85, %v84
    %v100 = vpack.c.b16 %v87, %v86
    %v101 = vpack.c.b16 %v89, %v88
    %v102 = vpack.c.b16 %v91, %v90
    %v103 = vpack.c.b16 %v93, %v92
    %v104 = vpack.c.b16 %v95, %v94
    %v105 = vpack.c.b16 %v97, %v96
    %114 = vmatprep.subr.bf16.mxu0 0
    %115 = vmatpush1.bf16.msra.mxu0 %v98
    %116 = vmatprep.subr.bf16.mxu0 0
    %117 = vmatpush1.bf16.msra.mxu0 %v99
    %118 = vmatprep.subr.bf16.mxu0 0
    %119 = vmatpush1.bf16.msra.mxu0 %v100
    %120 = vmatprep.subr.bf16.mxu0 0
    %121 = vmatpush1.bf16.msra.mxu0 %v101
    %122 = vmatprep.subr.bf16.mxu0 0
    %123 = vmatpush1.bf16.msra.mxu0 %v102
    %124 = vmatprep.subr.bf16.mxu0 0
    %125 = vmatpush1.bf16.msra.mxu0 %v103
    %126 = vmatprep.subr.bf16.mxu0 0
    %127 = vmatpush1.bf16.msra.mxu0 %v104
    %128 = vmatprep.subr.bf16.mxu0 0
    %129 = vmatpush1.bf16.msra.mxu0 %v105
    %130 = vmatprep.subr.bf16.mxu0 0
    %131 = vmatpush1.bf16.msra.mxu0 0
    %132 = vmatprep.subr.bf16.mxu0 0
    %133 = vmatpush1.bf16.msra.mxu0 0
    %134 = vmatprep.subr.bf16.mxu0 0
    %135 = vmatpush1.bf16.msra.mxu0 0
    %136 = vmatprep.subr.bf16.mxu0 0
    %137 = vmatpush1.bf16.msra.mxu0 0
    %138 = vmatprep.subr.bf16.mxu0 0
    %139 = vmatpush1.bf16.msra.mxu0 0
    %140 = vmatprep.subr.bf16.mxu0 0
    %141 = vmatpush1.bf16.msra.mxu0 0
    %142 = vmatprep.subr.bf16.mxu0 0
    %143 = vmatpush1.bf16.msra.mxu0 0
    %144 = vmatprep.subr.bf16.mxu0 0
    %145 = vmatpush1.bf16.msra.mxu0 0
    %146 = vmatprep.mubr.bf16.mxu0 0
    %147 = vmatmul.mubr.bf16.gmra.mrb[0].mxu0 %v64
    %v148 = vpop.f32.mrb[0].mxu0
    %v149 = vadd.f32 %v58, %v148
    %v150 = vpop.f32.mrb[0].mxu0
    %v151 = vpop.f32.mrb[0].mxu0
    %v152 = vadd.f32 %v58, %v151
    %v153 = vpop.f32.mrb[0].mxu0
    %154 = vdwg.mxu0
    %v155 = vmax.f32 %v149, 0.0
    %v156 = vmax.f32 %v152, 0.0
    %v157 = vld [vmem:[#allocation2] sm:$0xff]
    %v158 = vld [vmem:[#allocation2 + $0x8] sm:$0xff]
    %v159 = vpack.c.bf16 %v156, %v155
    %v160 = vld [vmem:[%s3] sm:$0xf]
    %v161 = vld [vmem:[%s3 + $0x4] sm:$0xf]
    %v162 = vld [vmem:[%s3 + $0x8] sm:$0xf]
    %v163 = vld [vmem:[%s3 + $0xc] sm:$0xf]
    %v164 = vld [vmem:[%s3 + $0x10] sm:$0xf]
    %v165 = vld [vmem:[%s3 + $0x14] sm:$0xf]
    %v166 = vld [vmem:[%s3 + $0x18] sm:$0xf]
    %v167 = vld [vmem:[%s3 + $0x1c] sm:$0xf]
    %v176 = vunpack.c.l.b16 %v160
    %v177 = vunpack.c.l.b16 %v161
    %v178 = vunpack.c.l.b16 %v162
    %v179 = vunpack.c.l.b16 %v163
    %v180 = vunpack.c.l.b16 %v164
    %v181 = vunpack.c.l.b16 %v165
    %v182 = vunpack.c.l.b16 %v166
    %v183 = vunpack.c.l.b16 %v167
    %v184 = vpack.c.b16 %v177, %v176
    %v185 = vpack.c.b16 %v179, %v178
    %v186 = vpack.c.b16 %v181, %v180
    %v187 = vpack.c.b16 %v183, %v182
    %vm192 = vcmask 523264
    %v194 = vsel %vm192, %v159, 0
    %196 = vmatprep.subr.bf16.mxu0 0
    %197 = vmatpush1.bf16.msra.mxu0 %v184
    %198 = vmatprep.subr.bf16.mxu0 0
    %199 = vmatpush1.bf16.msra.mxu0 %v185
    %200 = vmatprep.subr.bf16.mxu0 0
    %201 = vmatpush1.bf16.msra.mxu0 %v186
    %202 = vmatprep.subr.bf16.mxu0 0
    %203 = vmatpush1.bf16.msra.mxu0 %v187
    %204 = vmatprep.subr.bf16.mxu0 0
    %205 = vmatpush1.bf16.msra.mxu0 0
    %206 = vmatprep.subr.bf16.mxu0 0
    %207 = vmatpush1.bf16.msra.mxu0 0
    %208 = vmatprep.subr.bf16.mxu0 0
    %209 = vmatpush1.bf16.msra.mxu0 0
    %210 = vmatprep.subr.bf16.mxu0 0
    %211 = vmatpush1.bf16.msra.mxu0 0
    %212 = vmatprep.subr.bf16.mxu0 0
    %213 = vmatpush1.bf16.msra.mxu0 0
    %214 = vmatprep.subr.bf16.mxu0 0
    %215 = vmatpush1.bf16.msra.mxu0 0
    %216 = vmatprep.subr.bf16.mxu0 0
    %217 = vmatpush1.bf16.msra.mxu0 0
    %218 = vmatprep.subr.bf16.mxu0 0
    %219 = vmatpush1.bf16.msra.mxu0 0
    %220 = vmatprep.subr.bf16.mxu0 0
    %221 = vmatpush1.bf16.msra.mxu0 0
    %222 = vmatprep.subr.bf16.mxu0 0
    %223 = vmatpush1.bf16.msra.mxu0 0
    %224 = vmatprep.subr.bf16.mxu0 0
    %225 = vmatpush1.bf16.msra.mxu0 0
    %226 = vmatprep.subr.bf16.mxu0 0
    %227 = vmatpush1.bf16.msra.mxu0 0
    %228 = vmatprep.mubr.bf16.mxu0 0
    %229 = vmatmul.mubr.bf16.gmra.mrb[0].mxu0 %v194
    %v230 = vpop.f32.mrb[0].mxu0
    %v231 = vadd.f32 0.0, %v230
    %v232 = vpop.f32.mrb[0].mxu0
    %v233 = vpop.f32.mrb[0].mxu0
    %v234 = vadd.f32 0.0, %v233
    %v235 = vpop.f32.mrb[0].mxu0
    %236 = vdwg.mxu0
    %v237 = vadd.f32 %v157, %v231
    %v238 = vadd.f32 %v158, %v234
    %239 = vst [vmem:[#allocation2] sm:$0xff] %v237
    %240 = vst [vmem:[#allocation2 + $0x8] sm:$0xff] %v238
    // Predicated region
    $region26: #{tpu_custom_call.1} parent=1 // pred_check
      %p241 = pneg %p22
    $region27: #{tpu_custom_call.1} parent=1 // pred_check_branch
      %243 = sbr.rel (%p241) target = $region29
    $region28: #{tpu_custom_call.1} parent=1 // pred_region
      %v244 = vld [vmem:[#allocation2] sm:$0xff]
      %v245 = vld [vmem:[#allocation2 + $0x8] sm:$0xff]
      %246 = vst [vmem:[#allocation3] sm:$0xff] %v244
      %247 = vst [vmem:[#allocation3 + $0x8] sm:$0xff] %v245
    $region29: #{tpu_custom_call.1} parent=1 // pred_fallthru
      _
    // Predicated region
    $region30: #{tpu_custom_call.1} parent=1 // pred_check
      _
    $region31: #{tpu_custom_call.1} parent=1 // pred_check_branch
      %249 = sbr.rel (0) target = $region33
    $region32: #{tpu_custom_call.1} parent=1 // pred_region
      %s251 = ssub.s32 256, 256
      %252 = vsyncadd [#allocation4], %s251
      %s253 = sshll.u32 [#allocation3], 4
      %s254 = int_to_ptr.vmem [resolvable:$true] %s253
      %259 = dma.vmem_to_hbm [thread:$0]  %s254, 256, %s5, [#allocation4], 128, 128, 8
    $region33: #{tpu_custom_call.1} parent=1 // pred_fallthru
      _
    // Predicated region
    $region34: #{tpu_custom_call.1} parent=1 // pred_check
      _
    $region35: #{tpu_custom_call.1} parent=1 // pred_check_branch
      %261 = sbr.rel (0) target = $region37
    $region36: #{tpu_custom_call.1} parent=1 // pred_region
      %262 = dma.done [#allocation4], 256
    $region37: #{tpu_custom_call.1} parent=1 // pred_fallthru
      _
    %263 = vsyncpa [#allocation4], 1

</llo_original>
